<compile_context>
chip_gen: v6e
topology: v6e:2x2x1
jax: 0.10.0
libtpu: 0.0.40
codegen_flags: <defaults>
</compile_context>

<pallas_src>
import jax
import jax.numpy as jnp
from jax.experimental import pallas as pl
from jax.experimental.pallas import tpu as pltpu


def _pick_bm(B):
    """Batch (M) tile: sublane-aligned if possible, else the whole batch."""
    for cand in (256, 128, 64, 32, 16, 8):
        if B % cand == 0:
            return cand
    return B  # tiny batch: single M block (block == full dim is always legal)


def _pick_tk(D, HID, budget_bytes=4 << 20):
    """K tile over flattened features: largest 128-multiple divisor of D whose
    double-buffered bf16 w1 tile fits the budget; prefer >= 2 K-steps so the
    weight stream actually pipelines."""
    cands = [t for t in range(128, D + 1, 128) if D % t == 0]
    if not cands:
        return D  # D not a multiple of 128: fall back to a single full-D block
    fitting = [t for t in cands if 2 * t * HID * 2 <= budget_bytes]
    tk = max(fitting) if fitting else min(cands)
    if tk == D and len(cands) > 1:
        tk = sorted(cands)[-2]  # keep at least 2 K-steps for pipelining
    return tk


def _triplet_embed_kernel(a_ref, p_ref, n_ref, w1_ref, b1_ref, w2_ref, b2_ref,
                          o_ref, acc_ref):
    k = pl.program_id(1)

    @pl.when(k == 0)
    def _init():
        acc_ref[...] = jnp.zeros_like(acc_ref)

    # Cast BEFORE the concat: the folded (3*bm, tk) temp is bf16 only.
    x = jnp.concatenate(
        [a_ref[...].astype(jnp.bfloat16),
         p_ref[...].astype(jnp.bfloat16),
         n_ref[...].astype(jnp.bfloat16)],
        axis=0)

    # Layer-1 partial product for this K tile, f32 accumulation in VMEM.
    acc_ref[...] += jnp.dot(x, w1_ref[...], preferred_element_type=jnp.float32)

    # Bias + ReLU + second matmul only once the K reduction is complete.
    @pl.when(k == pl.num_programs(1) - 1)
    def _finalize():
        bm = a_ref.shape[0]
        h = jnp.maximum(acc_ref[...] + b1_ref[...], 0.0).astype(jnp.bfloat16)
        out = jnp.dot(h, w2_ref[...], preferred_element_type=jnp.float32)
        out = (out + b2_ref[...]).astype(o_ref.dtype)
        o_ref[0, :, :] = out[0 * bm:1 * bm]
        o_ref[1, :, :] = out[1 * bm:2 * bm]
        o_ref[2, :, :] = out[2 * bm:3 * bm]


def triplet_net_forward(a, p, n, params):
    """Mirrors TripletNet.forward: returns (emb_a, emb_p, emb_n)."""
    w1, b1, w2, b2 = params
    B = a.shape[0]
    D, HID = w1.shape
    EMB = w2.shape[1]

    # Flatten NCHW -> [B, C*H*W] (metadata reshape, no copy / no host stack).
    a_flat = a.reshape(B, -1)
    p_flat = p.reshape(B, -1)
    n_flat = n.reshape(B, -1)
    assert a_flat.shape[1] == D

    bm = _pick_bm(B)
    tk = _pick_tk(D, HID)
    grid = (B // bm, D // tk)  # (M parallel, K arbitrary)

    flops = 2 * 3 * B * D * HID + 2 * 3 * B * HID * EMB
    bytes_accessed = (3 * B * D * a_flat.dtype.itemsize
                      + D * HID * w1.dtype.itemsize
                      + HID * b1.dtype.itemsize
                      + HID * EMB * w2.dtype.itemsize
                      + EMB * b2.dtype.itemsize
                      + 3 * B * EMB * 4)

    out = pl.pallas_call(
        _triplet_embed_kernel,
        out_shape=jax.ShapeDtypeStruct((3, B, EMB), jnp.float32),
        grid_spec=pltpu.PrefetchScalarGridSpec(
            num_scalar_prefetch=0,
            grid=grid,
            in_specs=[
                pl.BlockSpec((bm, tk), lambda m, k: (m, k)),    # anchor
                pl.BlockSpec((bm, tk), lambda m, k: (m, k)),    # positive
                pl.BlockSpec((bm, tk), lambda m, k: (m, k)),    # negative
                # TODO(synk): sweep pipeline_mode=pl.Buffered(3) on w1 if the
                # K pipeline shows exposed DMA (most likely on v5e's HBM BW).
                pl.BlockSpec((tk, HID), lambda m, k: (k, 0)),   # w1 (streamed)
                pl.BlockSpec((1, HID), lambda m, k: (0, 0)),    # b1
                pl.BlockSpec((HID, EMB), lambda m, k: (0, 0)),  # w2 (resident)
                pl.BlockSpec((1, EMB), lambda m, k: (0, 0)),    # b2
            ],
            out_specs=pl.BlockSpec((3, bm, EMB), lambda m, k: (0, m, 0)),
            scratch_shapes=[pltpu.VMEM((3 * bm, HID), jnp.float32)],
        ),
        compiler_params=pltpu.CompilerParams(
            dimension_semantics=("parallel", "arbitrary"),
            # 32 MiB: raises v5e's 16 MiB default, safe within v7x's 64 MiB.
            vmem_limit_bytes=32 * 1024 * 1024,
        ),
        cost_estimate=pl.CostEstimate(flops=flops, transcendentals=0,
                                      bytes_accessed=bytes_accessed),
    )(a_flat, p_flat, n_flat, w1, b1, w2, b2)

    return out[0], out[1], out[2]


def _reference_forward(a, p, n, params):
    """Pure-JAX reference with identical dtype handling (bf16 operands,
    f32 accumulation)."""
    w1, b1, w2, b2 = params

    def emb(x):
        xf = x.reshape(x.shape[0], -1).astype(jnp.bfloat16)
        h = jnp.dot(xf, w1, preferred_element_type=jnp.float32)
        h = jnp.maximum(h + b1, 0.0).astype(jnp.bfloat16)
        o = jnp.dot(h, w2, preferred_element_type=jnp.float32)
        return o + b2

    return emb(a), emb(p), emb(n)


if __name__ == "__main__":
    key = jax.random.PRNGKey(0)
    B, C, Himg, Wimg = 2, 4, 16, 16
    D = C * Himg * Wimg          # 1024
    HID = 128
    EMB = 128

    k_a, k_p, k_n, k_w1, k_b1, k_w2, k_b2 = jax.random.split(key, 7)
    a = jax.random.normal(k_a, (B, C, Himg, Wimg), dtype=jnp.float32)
    p = jax.random.normal(k_p, (B, C, Himg, Wimg), dtype=jnp.float32)
    n = jax.random.normal(k_n, (B, C, Himg, Wimg), dtype=jnp.float32)

    # Deterministic synthetic "embeddingnet" parameters.
    # Weights in bf16 (MXU-native, half the weight DMA); biases in f32.
    w1 = (jax.random.normal(k_w1, (D, HID), dtype=jnp.float32) * 0.02
          ).astype(jnp.bfloat16)
    b1 = jax.random.normal(k_b1, (1, HID), dtype=jnp.float32) * 0.01
    w2 = (jax.random.normal(k_w2, (HID, EMB), dtype=jnp.float32) * 0.02
          ).astype(jnp.bfloat16)
    b2 = jax.random.normal(k_b2, (1, EMB), dtype=jnp.float32) * 0.01
    params = (w1, b1, w2, b2)

    ea, ep, en = jax.jit(triplet_net_forward)(a, p, n, params)
    jax.block_until_ready((ea, ep, en))

    ra, rp, rn = _reference_forward(a, p, n, params)
    assert ea.shape == (B, EMB) and ep.shape == (B, EMB) and en.shape == (B, EMB)
    # bf16 operands introduce ~1e-2 relative error vs a pure-f32 torch ref.
    assert jnp.allclose(ea, ra, atol=1e-2, rtol=1e-2)
    assert jnp.allclose(ep, rp, atol=1e-2, rtol=1e-2)
    assert jnp.allclose(en, rn, atol=1e-2, rtol=1e-2)

    print("KERNEL_OK")
</pallas_src>

<mosaic_0001>
module attributes {stable_mosaic.version = 11 : i64} {
  func.func @_triplet_embed_kernel(%arg0: i32, %arg1: i32, %arg2: memref<2x512xf32, #tpu.memory_space<vmem>>, %arg3: memref<2x512xf32, #tpu.memory_space<vmem>>, %arg4: memref<2x512xf32, #tpu.memory_space<vmem>>, %arg5: memref<512x128xbf16, #tpu.memory_space<vmem>>, %arg6: memref<1x128xf32, #tpu.memory_space<vmem>>, %arg7: memref<128x128xbf16, #tpu.memory_space<vmem>>, %arg8: memref<1x128xf32, #tpu.memory_space<vmem>>, %arg9: memref<3x2x128xf32, #tpu.memory_space<vmem>>, %arg10: memref<6x128xf32, #tpu.memory_space<vmem>>) attributes {dimension_semantics = [#tpu.dimension_semantics<parallel>, #tpu.dimension_semantics<arbitrary>], iteration_bounds = array<i64: 1, 2>, scalar_prefetch = 0 : i64, scratch_operands = 1 : i64, tpu.core_type = #tpu.core_type<tc>, window_params = [{transform_indices = @transform_0, window_bounds = array<i64: 2, 512>}, {transform_indices = @transform_1, window_bounds = array<i64: 2, 512>}, {transform_indices = @transform_2, window_bounds = array<i64: 2, 512>}, {transform_indices = @transform_3, window_bounds = array<i64: 512, 128>}, {pipeline_mode = #tpu.pipeline_mode<synchronous>, transform_indices = @transform_4, window_bounds = array<i64: 1, 128>}, {pipeline_mode = #tpu.pipeline_mode<synchronous>, transform_indices = @transform_5, window_bounds = array<i64: 128, 128>}, {pipeline_mode = #tpu.pipeline_mode<synchronous>, transform_indices = @transform_6, window_bounds = array<i64: 1, 128>}, {transform_indices = @transform_7, window_bounds = array<i64: 3, 2, 128>}]} {
    %c0_i32 = arith.constant 0 : i32
    %0 = arith.cmpi eq, %arg1, %c0_i32 : i32
    %1 = arith.extui %0 : i1 to i32
    %c0_i32_0 = arith.constant 0 : i32
    %2 = arith.cmpi ne, %1, %c0_i32_0 : i32
    scf.if %2 {
      %cst_13 = arith.constant 0.000000e+00 : f32
      %18 = vector.broadcast %cst_13 : f32 to vector<6x128xf32>
      %c0_14 = arith.constant 0 : index
      %c0_15 = arith.constant 0 : index
      %19 = vector.load %arg10[%c0_14, %c0_15] : memref<6x128xf32, #tpu.memory_space<vmem>>, vector<6x128xf32>
      tpu.vector_store %arg10[%c0_14, %c0_15], %18 {strides = array<i32>} : memref<6x128xf32, #tpu.memory_space<vmem>>, vector<6x128xf32>,
    } else {
    }
    %c0 = arith.constant 0 : index
    %c0_1 = arith.constant 0 : index
    %3 = vector.load %arg2[%c0, %c0_1] : memref<2x512xf32, #tpu.memory_space<vmem>>, vector<2x512xf32>
    %4 = arith.truncf %3 : vector<2x512xf32> to vector<2x512xbf16>
    %c0_2 = arith.constant 0 : index
    %c0_3 = arith.constant 0 : index
    %5 = vector.load %arg3[%c0_2, %c0_3] : memref<2x512xf32, #tpu.memory_space<vmem>>, vector<2x512xf32>
    %6 = arith.truncf %5 : vector<2x512xf32> to vector<2x512xbf16>
    %c0_4 = arith.constant 0 : index
    %c0_5 = arith.constant 0 : index
    %7 = vector.load %arg4[%c0_4, %c0_5] : memref<2x512xf32, #tpu.memory_space<vmem>>, vector<2x512xf32>
    %8 = arith.truncf %7 : vector<2x512xf32> to vector<2x512xbf16>
    %9 = tpu.concatenate %4, %6, %8 in 0 : vector<2x512xbf16>, vector<2x512xbf16>, vector<2x512xbf16> -> vector<6x512xbf16>
    %c0_6 = arith.constant 0 : index
    %c0_7 = arith.constant 0 : index
    %10 = vector.load %arg10[%c0_6, %c0_7] : memref<6x128xf32, #tpu.memory_space<vmem>>, vector<6x128xf32>
    %c0_8 = arith.constant 0 : index
    %c0_9 = arith.constant 0 : index
    %11 = vector.load %arg5[%c0_8, %c0_9] : memref<512x128xbf16, #tpu.memory_space<vmem>>, vector<512x128xbf16>
    %cst = arith.constant dense<0.000000e+00> : vector<6x128xf32>
    %12 = tpu.matmul %9, %11, %cst {dimension_numbers = #tpu.dot_dimension_numbers<[1], [0], [0], [1], [0, 0, 1, 1], [], []>} : vector<6x512xbf16>, vector<512x128xbf16>, vector<6x128xf32> -> vector<6x128xf32>
    %13 = arith.addf %10, %12 : vector<6x128xf32>
    %c0_10 = arith.constant 0 : index
    %c0_11 = arith.constant 0 : index
    %14 = vector.load %arg10[%c0_10, %c0_11] : memref<6x128xf32, #tpu.memory_space<vmem>>, vector<6x128xf32>
    tpu.vector_store %arg10[%c0_10, %c0_11], %13 {strides = array<i32>} : memref<6x128xf32, #tpu.memory_space<vmem>>, vector<6x128xf32>,
    %c1_i32 = arith.constant 1 : i32
    %15 = arith.cmpi eq, %arg1, %c1_i32 : i32
    %16 = arith.extui %15 : i1 to i32
    %c0_i32_12 = arith.constant 0 : i32
    %17 = arith.cmpi ne, %16, %c0_i32_12 : i32
    scf.if %17 {
      %c0_13 = arith.constant 0 : index
      %c0_14 = arith.constant 0 : index
      %18 = vector.load %arg10[%c0_13, %c0_14] : memref<6x128xf32, #tpu.memory_space<vmem>>, vector<6x128xf32>
      %c0_15 = arith.constant 0 : index
      %c0_16 = arith.constant 0 : index
      %19 = vector.load %arg6[%c0_15, %c0_16] : memref<1x128xf32, #tpu.memory_space<vmem>>, vector<1x128xf32>
      %20 = vector.broadcast %19 : vector<1x128xf32> to vector<6x128xf32>
      %21 = arith.addf %18, %20 : vector<6x128xf32>
      %cst_17 = arith.constant 0.000000e+00 : f32
      %22 = vector.broadcast %cst_17 : f32 to vector<6x128xf32>
      %23 = arith.maximumf %21, %22 : vector<6x128xf32>
      %24 = arith.truncf %23 : vector<6x128xf32> to vector<6x128xbf16>
      %c0_18 = arith.constant 0 : index
      %c0_19 = arith.constant 0 : index
      %25 = vector.load %arg7[%c0_18, %c0_19] : memref<128x128xbf16, #tpu.memory_space<vmem>>, vector<128x128xbf16>
      %cst_20 = arith.constant dense<0.000000e+00> : vector<6x128xf32>
      %26 = tpu.matmul %24, %25, %cst_20 {dimension_numbers = #tpu.dot_dimension_numbers<[1], [0], [0], [1], [0, 0, 1, 1], [], []>} : vector<6x128xbf16>, vector<128x128xbf16>, vector<6x128xf32> -> vector<6x128xf32>
      %c0_21 = arith.constant 0 : index
      %c0_22 = arith.constant 0 : index
      %27 = vector.load %arg8[%c0_21, %c0_22] : memref<1x128xf32, #tpu.memory_space<vmem>>, vector<1x128xf32>
      %28 = vector.broadcast %27 : vector<1x128xf32> to vector<6x128xf32>
      %29 = arith.addf %26, %28 : vector<6x128xf32>
      %30 = vector.extract_strided_slice %29 {offsets = [0, 0], sizes = [2, 128], strides = [1, 1]} : vector<6x128xf32> to vector<2x128xf32>
      %c0_23 = arith.constant 0 : index
      %c0_24 = arith.constant 0 : index
      %c0_25 = arith.constant 0 : index
      %31 = vector.load %arg9[%c0_23, %c0_24, %c0_25] : memref<3x2x128xf32, #tpu.memory_space<vmem>>, vector<1x2x128xf32>
      %32 = vector.shape_cast %31 : vector<1x2x128xf32> to vector<2x128xf32>
      %33 = vector.shape_cast %30 : vector<2x128xf32> to vector<1x2x128xf32>
      tpu.vector_store %arg9[%c0_23, %c0_24, %c0_25], %33 {strides = array<i32>} : memref<3x2x128xf32, #tpu.memory_space<vmem>>, vector<1x2x128xf32>,
      %34 = vector.extract_strided_slice %29 {offsets = [2, 0], sizes = [2, 128], strides = [1, 1]} : vector<6x128xf32> to vector<2x128xf32>
      %c1 = arith.constant 1 : index
      %c0_26 = arith.constant 0 : index
      %c0_27 = arith.constant 0 : index
      %35 = vector.load %arg9[%c1, %c0_26, %c0_27] : memref<3x2x128xf32, #tpu.memory_space<vmem>>, vector<1x2x128xf32>
      %36 = vector.shape_cast %35 : vector<1x2x128xf32> to vector<2x128xf32>
      %37 = vector.shape_cast %34 : vector<2x128xf32> to vector<1x2x128xf32>
      tpu.vector_store %arg9[%c1, %c0_26, %c0_27], %37 {strides = array<i32>} : memref<3x2x128xf32, #tpu.memory_space<vmem>>, vector<1x2x128xf32>,
      %38 = vector.extract_strided_slice %29 {offsets = [4, 0], sizes = [2, 128], strides = [1, 1]} : vector<6x128xf32> to vector<2x128xf32>
      %c2 = arith.constant 2 : index
      %c0_28 = arith.constant 0 : index
      %c0_29 = arith.constant 0 : index
      %39 = vector.load %arg9[%c2, %c0_28, %c0_29] : memref<3x2x128xf32, #tpu.memory_space<vmem>>, vector<1x2x128xf32>
      %40 = vector.shape_cast %39 : vector<1x2x128xf32> to vector<2x128xf32>
      %41 = vector.shape_cast %38 : vector<2x128xf32> to vector<1x2x128xf32>
      tpu.vector_store %arg9[%c2, %c0_28, %c0_29], %41 {strides = array<i32>} : memref<3x2x128xf32, #tpu.memory_space<vmem>>, vector<1x2x128xf32>,
    } else {
    }
    return
  }
  func.func @transform_0(%arg0: i32, %arg1: i32) -> (i32, i32) {
    %c0_i32 = arith.constant 0 : i32
    return %arg0, %arg1 : i32, i32
  }
  func.func @transform_1(%arg0: i32, %arg1: i32) -> (i32, i32) {
    %c0_i32 = arith.constant 0 : i32
    return %arg0, %arg1 : i32, i32
  }
  func.func @transform_2(%arg0: i32, %arg1: i32) -> (i32, i32) {
    %c0_i32 = arith.constant 0 : i32
    return %arg0, %arg1 : i32, i32
  }
  func.func @transform_3(%arg0: i32, %arg1: i32) -> (i32, i32) {
    %c0_i32 = arith.constant 0 : i32
    %c0_i32_0 = arith.constant 0 : i32
    return %arg1, %c0_i32 : i32, i32
  }
  func.func @transform_4(%arg0: i32, %arg1: i32) -> (i32, i32) {
    %c0_i32 = arith.constant 0 : i32
    %c0_i32_0 = arith.constant 0 : i32
    %c0_i32_1 = arith.constant 0 : i32
    return %c0_i32, %c0_i32_0 : i32, i32
  }
  func.func @transform_5(%arg0: i32, %arg1: i32) -> (i32, i32) {
    %c0_i32 = arith.constant 0 : i32
    %c0_i32_0 = arith.constant 0 : i32
    %c0_i32_1 = arith.constant 0 : i32
    return %c0_i32, %c0_i32_0 : i32, i32
  }
  func.func @transform_6(%arg0: i32, %arg1: i32) -> (i32, i32) {
    %c0_i32 = arith.constant 0 : i32
    %c0_i32_0 = arith.constant 0 : i32
    %c0_i32_1 = arith.constant 0 : i32
    return %c0_i32, %c0_i32_0 : i32, i32
  }
  func.func @transform_7(%arg0: i32, %arg1: i32) -> (i32, i32, i32) {
    %c0_i32 = arith.constant 0 : i32
    %c0_i32_0 = arith.constant 0 : i32
    %c0_i32_1 = arith.constant 0 : i32
    return %c0_i32, %arg0, %c0_i32_0 : i32, i32, i32
  }
}

</mosaic_0001>

<llo_original>
// kernel: triplet_net_forward.1
$region0: #{triplet_net_forward.1}
  #allocation0 [shape = 'u32[]', space=smem, size = 0x4, offset = 0x4, fixed_abs, tag = 'smem constant byte address 0x4 - core index']
  #allocation1 [shape = 'u32[144,128]{1,0:T(1,128)}', space=vmem, size = 0x12000, scoped, tag = 'internal scratch']
  #allocation2 [shape = 'f32[6,128]{1,0:T(8,128)}', space=vmem, size = 0x1000, scoped, tag = 'scratch operand']
  %s0 = inlined_call_operand.vmem [shape: f32[2,1024], index: 0, kind: input, shape index: {}]
  %s1 = inlined_call_operand.vmem [shape: f32[2,1024], index: 1, kind: input, shape index: {}]
  %s2 = inlined_call_operand.vmem [shape: f32[2,1024], index: 2, kind: input, shape index: {}]
  %s3 = inlined_call_operand.hbm [shape: bf16[1024,128], index: 3, kind: input, shape index: {}]
  %s4 = inlined_call_operand.vmem [shape: f32[1,128], index: 4, kind: input, shape index: {}]
  %s5 = inlined_call_operand.vmem [shape: bf16[128,128], index: 5, kind: input, shape index: {}]
  %s6 = inlined_call_operand.vmem [shape: f32[1,128], index: 6, kind: input, shape index: {}]
  %s7 = inlined_call_operand.vmem [shape: f32[3,2,128], index: 7, kind: output, shape index: {}]
  %s8 = sld [smem:[#allocation0]]
  $region73: #{triplet_net_forward.1} parent=0
    _
  %s10 = ssub.s32 1, %s8
  %s11 = scalar_select 0, %s10, %s8
  $region1: #{triplet_net_forward.1} parent=0
    #allocation3 [shape = 'u8[262144]{0}', space=vmem, size = 0x40000, scoped, tag = 'input window, operand 3']
    #allocation4 [shape = 's32[2]{0}', space=sflag, size = 0x8, scoped, tag = 'scoped memory for triplet_net_forward.1']
    %12 = vsyncpa [#allocation4], 0
    %s13 = scalar_lea.sflag [#allocation4], 1
    %14 = vsyncpa %s13, 0
    loop: start=0, step=1, limit=4
    $region2: #{triplet_net_forward.1} parent=1 // loop_pre_header
      _
    $region3: #{triplet_net_forward.1} parent=1 // loop_header
      %s16 = sphi 0, %s20
      %p17 = scmp.ge.s32.totalorder %s16, 4
      %s23 = sphi 0, %s35
      %s24 = sphi 0, %s31
      %s25 = sphi 0, %s23
      %s26 = sphi 0, %s24
      %s27 = sphi 0, %s25
      %s28 = sphi 0, %s26
      %s40 = sphi 0, %s42
      %s43 = sphi 0, %s40
      %s44 = sphi 0, %s43
      %s60 = sphi 0, %s44
      %s68 = sphi 0, %s70
      %s71 = sphi 0, %s68
      %s72 = sphi 0, %s71
      %s88 = sphi 0, %s72
      %s96 = sphi 0, %s98
      %s99 = sphi 0, %s96
      %s100 = sphi 0, %s99
      %s116 = sphi 0, %s100
      %s122 = sphi 0, %s124
      %s125 = sphi 0, %s122
      %s126 = sphi 0, %s125
      %s142 = sphi 0, %s126
      %s146 = sphi 0, %s146
      %s148 = sphi 0, %s146
      %s149 = sphi 0, %s148
      %s163 = sphi 0, %s149
      %s167 = sphi 0, %s167
      %s169 = sphi 0, %s167
      %s170 = sphi 0, %s169
      %s184 = sphi 0, %s170
      %s188 = sphi 0, %s188
      %s190 = sphi 0, %s188
      %s191 = sphi 0, %s190
      %s205 = sphi 0, %s191
      %s211 = sphi 0, %s213
      %s214 = sphi 0, %s211
      %s215 = sphi 0, %s214
      %s231 = sphi 0, %s215
    $region4: #{triplet_net_forward.1} parent=1 // loop_header_branch
      %19 = sbr.rel (%p17) target = $region8
    $region5: #{triplet_net_forward.1} parent=1 // loop_body
      %s21 = ssub.s32 %s16, 1
      %s22 = ssub.s32 %s16, 2
      %s29 = sadd.s32 1, %s24
      %p30 = scmp.ge.s32.totalorder %s29, 2
      %s31 = scalar_select %p30, 0, %s29
      %s32 = sadd.s32 1, %s23
      %s33 = scalar_select %p30, %s32, %s23
      %p34 = scmp.ge.s32.totalorder %s33, 1
      %s35 = scalar_select %p34, 0, %s33
      %s36 = ssub.s32 %s23, %s35
      %s37 = ssub.s32 %s24, %s31
      %s38 = sor.u32 %s36, %s37
      %p39 = scmp.eq.s32.totalorder %s38, 0
      %s41 = sadd.s32 %s40, 1
      %s42 = scalar_select %p39, %s40, %s41
      %p45 = pneg %p39
      %p46 = scmp.eq.s32.totalorder %s16, 1
      %p47 = por %p45, %p46
      %p48 = scmp.ne.s32.totalorder %s40, %s43
      %p49 = scmp.eq.s32.totalorder %s16, 0
      %p50 = por %p48, %p49
      %p51 = scmp.ne.s32.totalorder %s40, %s43
      %p52 = scmp.eq.s32.totalorder %s21, 1
      %p53 = por %p51, %p52
      %p54 = scmp.ne.s32.totalorder %s43, %s44
      %p55 = scmp.eq.s32.totalorder %s21, 0
      %p56 = por %p54, %p55
      %p57 = scmp.ne.s32.totalorder %s43, %s44
      %p58 = scmp.eq.s32.totalorder %s22, 1
      %p59 = por %p57, %p58
      %p61 = scmp.ne.s32.totalorder %s44, %s60
      %p62 = scmp.eq.s32.totalorder %s22, 0
      %p63 = por %p61, %p62
      %s64 = ssub.s32 %s23, %s35
      %s65 = ssub.s32 %s24, %s31
      %s66 = sor.u32 %s64, %s65
      %p67 = scmp.eq.s32.totalorder %s66, 0
      %s69 = sadd.s32 %s68, 1
      %s70 = scalar_select %p67, %s68, %s69
      %p73 = pneg %p67
      %p74 = scmp.eq.s32.totalorder %s16, 1
      %p75 = por %p73, %p74
      %p76 = scmp.ne.s32.totalorder %s68, %s71
      %p77 = scmp.eq.s32.totalorder %s16, 0
      %p78 = por %p76, %p77
      %p79 = scmp.ne.s32.totalorder %s68, %s71
      %p80 = scmp.eq.s32.totalorder %s21, 1
      %p81 = por %p79, %p80
      %p82 = scmp.ne.s32.totalorder %s71, %s72
      %p83 = scmp.eq.s32.totalorder %s21, 0
      %p84 = por %p82, %p83
      %p85 = scmp.ne.s32.totalorder %s71, %s72
      %p86 = scmp.eq.s32.totalorder %s22, 1
      %p87 = por %p85, %p86
      %p89 = scmp.ne.s32.totalorder %s72, %s88
      %p90 = scmp.eq.s32.totalorder %s22, 0
      %p91 = por %p89, %p90
      %s92 = ssub.s32 %s23, %s35
      %s93 = ssub.s32 %s24, %s31
      %s94 = sor.u32 %s92, %s93
      %p95 = scmp.eq.s32.totalorder %s94, 0
      %s97 = sadd.s32 %s96, 1
      %s98 = scalar_select %p95, %s96, %s97
      %p101 = pneg %p95
      %p102 = scmp.eq.s32.totalorder %s16, 1
      %p103 = por %p101, %p102
      %p104 = scmp.ne.s32.totalorder %s96, %s99
      %p105 = scmp.eq.s32.totalorder %s16, 0
      %p106 = por %p104, %p105
      %p107 = scmp.ne.s32.totalorder %s96, %s99
      %p108 = scmp.eq.s32.totalorder %s21, 1
      %p109 = por %p107, %p108
      %p110 = scmp.ne.s32.totalorder %s99, %s100
      %p111 = scmp.eq.s32.totalorder %s21, 0
      %p112 = por %p110, %p111
      %p113 = scmp.ne.s32.totalorder %s99, %s100
      %p114 = scmp.eq.s32.totalorder %s22, 1
      %p115 = por %p113, %p114
      %p117 = scmp.ne.s32.totalorder %s100, %s116
      %p118 = scmp.eq.s32.totalorder %s22, 0
      %p119 = por %p117, %p118
      %s120 = ssub.s32 %s24, %s31
      %p121 = scmp.eq.s32.totalorder %s120, 0
      %s123 = sadd.s32 %s122, 1
      %s124 = scalar_select %p121, %s122, %s123
      %p127 = pneg %p121
      %p128 = scmp.eq.s32.totalorder %s16, 1
      %p129 = por %p127, %p128
      %p130 = scmp.ne.s32.totalorder %s122, %s125
      %p131 = scmp.eq.s32.totalorder %s16, 0
      %p132 = por %p130, %p131
      %p133 = scmp.ne.s32.totalorder %s122, %s125
      %p134 = scmp.eq.s32.totalorder %s21, 1
      %p135 = por %p133, %p134
      %p136 = scmp.ne.s32.totalorder %s125, %s126
      %p137 = scmp.eq.s32.totalorder %s21, 0
      %p138 = por %p136, %p137
      %p139 = scmp.ne.s32.totalorder %s125, %s126
      %p140 = scmp.eq.s32.totalorder %s22, 1
      %p141 = por %p139, %p140
      %p143 = scmp.ne.s32.totalorder %s126, %s142
      %p144 = scmp.eq.s32.totalorder %s22, 0
      %p145 = por %p143, %p144
      %s147 = sadd.s32 %s146, 1
      %p150 = scmp.eq.s32.totalorder %s16, 1
      %p151 = scmp.ne.s32.totalorder %s146, %s148
      %p152 = scmp.eq.s32.totalorder %s16, 0
      %p153 = por %p151, %p152
      %p154 = scmp.ne.s32.totalorder %s146, %s148
      %p155 = scmp.eq.s32.totalorder %s21, 1
      %p156 = por %p154, %p155
      %p157 = scmp.ne.s32.totalorder %s148, %s149
      %p158 = scmp.eq.s32.totalorder %s21, 0
      %p159 = por %p157, %p158
      %p160 = scmp.ne.s32.totalorder %s148, %s149
      %p161 = scmp.eq.s32.totalorder %s22, 1
      %p162 = por %p160, %p161
      %p164 = scmp.ne.s32.totalorder %s149, %s163
      %p165 = scmp.eq.s32.totalorder %s22, 0
      %p166 = por %p164, %p165
      %s168 = sadd.s32 %s167, 1
      %p171 = scmp.eq.s32.totalorder %s16, 1
      %p172 = scmp.ne.s32.totalorder %s167, %s169
      %p173 = scmp.eq.s32.totalorder %s16, 0
      %p174 = por %p172, %p173
      %p175 = scmp.ne.s32.totalorder %s167, %s169
      %p176 = scmp.eq.s32.totalorder %s21, 1
      %p177 = por %p175, %p176
      %p178 = scmp.ne.s32.totalorder %s169, %s170
      %p179 = scmp.eq.s32.totalorder %s21, 0
      %p180 = por %p178, %p179
      %p181 = scmp.ne.s32.totalorder %s169, %s170
      %p182 = scmp.eq.s32.totalorder %s22, 1
      %p183 = por %p181, %p182
      %p185 = scmp.ne.s32.totalorder %s170, %s184
      %p186 = scmp.eq.s32.totalorder %s22, 0
      %p187 = por %p185, %p186
      %s189 = sadd.s32 %s188, 1
      %p192 = scmp.eq.s32.totalorder %s16, 1
      %p193 = scmp.ne.s32.totalorder %s188, %s190
      %p194 = scmp.eq.s32.totalorder %s16, 0
      %p195 = por %p193, %p194
      %p196 = scmp.ne.s32.totalorder %s188, %s190
      %p197 = scmp.eq.s32.totalorder %s21, 1
      %p198 = por %p196, %p197
      %p199 = scmp.ne.s32.totalorder %s190, %s191
      %p200 = scmp.eq.s32.totalorder %s21, 0
      %p201 = por %p199, %p200
      %p202 = scmp.ne.s32.totalorder %s190, %s191
      %p203 = scmp.eq.s32.totalorder %s22, 1
      %p204 = por %p202, %p203
      %p206 = scmp.ne.s32.totalorder %s191, %s205
      %p207 = scmp.eq.s32.totalorder %s22, 0
      %p208 = por %p206, %p207
      %s209 = ssub.s32 %s23, %s35
      %p210 = scmp.eq.s32.totalorder %s209, 0
      %s212 = sadd.s32 %s211, 1
      %s213 = scalar_select %p210, %s211, %s212
      %p216 = pneg %p210
      %p217 = scmp.eq.s32.totalorder %s16, 1
      %p218 = por %p216, %p217
      %p219 = scmp.ne.s32.totalorder %s211, %s214
      %p220 = scmp.eq.s32.totalorder %s16, 0
      %p221 = por %p219, %p220
      %p222 = scmp.ne.s32.totalorder %s211, %s214
      %p223 = scmp.eq.s32.totalorder %s21, 1
      %p224 = por %p222, %p223
      %p225 = scmp.ne.s32.totalorder %s214, %s215
      %p226 = scmp.eq.s32.totalorder %s21, 0
      %p227 = por %p225, %p226
      %p228 = scmp.ne.s32.totalorder %s214, %s215
      %p229 = scmp.eq.s32.totalorder %s22, 1
      %p230 = por %p228, %p229
      %p232 = scmp.ne.s32.totalorder %s215, %s231
      %p233 = scmp.eq.s32.totalorder %s22, 0
      %p234 = por %p232, %p233
      %p235 = scmp.le.s32.totalorder 1, %s16
      %p236 = scmp.lt.s32.totalorder %s16, 3
      %p237 = pnand %p235, %p236
      %p238 = pneg %p237
      // Predicated region
      $region9: #{triplet_net_forward.1} parent=5 // pred_check
        _
      $region10: #{triplet_net_forward.1} parent=5 // pred_check_branch
        %240 = sbr.rel (%p237) target = $region12
      $region11: #{triplet_net_forward.1} parent=5 // pred_region
        %s241 = ssub.s32 %s16, 1
        // Predicated region
        $region13: #{triplet_net_forward.1} parent=11 // pred_check
          %p242 = pneg %p159
        $region14: #{triplet_net_forward.1} parent=11 // pred_check_branch
          %244 = sbr.rel (%p242) target = $region16
        $region15: #{triplet_net_forward.1} parent=11 // pred_region
          _
        $region16: #{triplet_net_forward.1} parent=11 // pred_fallthru
          _
        // Predicated region
        $region17: #{triplet_net_forward.1} parent=11 // pred_check
          %p245 = pneg %p180
        $region18: #{triplet_net_forward.1} parent=11 // pred_check_branch
          %247 = sbr.rel (%p245) target = $region20
        $region19: #{triplet_net_forward.1} parent=11 // pred_region
          _
        $region20: #{triplet_net_forward.1} parent=11 // pred_fallthru
          _
        // Predicated region
        $region21: #{triplet_net_forward.1} parent=11 // pred_check
          %p248 = pneg %p201
        $region22: #{triplet_net_forward.1} parent=11 // pred_check_branch
          %250 = sbr.rel (%p248) target = $region24
        $region23: #{triplet_net_forward.1} parent=11 // pred_region
          _
        $region24: #{triplet_net_forward.1} parent=11 // pred_fallthru
          _
      $region12: #{triplet_net_forward.1} parent=5 // pred_fallthru
        _
      %p251 = scmp.lt.s32.totalorder %s16, 2
      // Predicated region
      $region25: #{triplet_net_forward.1} parent=5 // pred_check
        %p252 = pneg %p251
      $region26: #{triplet_net_forward.1} parent=5 // pred_check_branch
        %254 = sbr.rel (%p252) target = $region28
      $region27: #{triplet_net_forward.1} parent=5 // pred_region
        // Predicated region
        $region29: #{triplet_net_forward.1} parent=27 // pred_check
          %p255 = pneg %p50
        $region30: #{triplet_net_forward.1} parent=27 // pred_check_branch
          %257 = sbr.rel (%p255) target = $region32
        $region31: #{triplet_net_forward.1} parent=27 // pred_region
          %s258 = smul.u32 4, %s24
          %p259 = scmp.lt.s32.totalorder %s23, 0
          %s260 = scalar_select %p259, %s23, 0
          %p261 = scmp.lt.s32.totalorder %s258, 7
          %s262 = scalar_select %p261, %s258, 7
          %s263 = smul.addr %s260, 8
          %s264 = sadd.s32 %s262, %s263
          %s265 = smul.addr %s264, 2
          %s266 = scalar_lea.vmem %s0, %s265
          %s267 = smul.u32 4, %s24
        $region32: #{triplet_net_forward.1} parent=27 // pred_fallthru
          _
        // Predicated region
        $region33: #{triplet_net_forward.1} parent=27 // pred_check
          %p268 = pneg %p78
        $region34: #{triplet_net_forward.1} parent=27 // pred_check_branch
          %270 = sbr.rel (%p268) target = $region36
        $region35: #{triplet_net_forward.1} parent=27 // pred_region
          %s271 = smul.u32 4, %s24
          %p272 = scmp.lt.s32.totalorder %s23, 0
          %s273 = scalar_select %p272, %s23, 0
          %p274 = scmp.lt.s32.totalorder %s271, 7
          %s275 = scalar_select %p274, %s271, 7
          %s276 = smul.addr %s273, 8
          %s277 = sadd.s32 %s275, %s276
          %s278 = smul.addr %s277, 2
          %s279 = scalar_lea.vmem %s1, %s278
          %s280 = smul.u32 4, %s24
        $region36: #{triplet_net_forward.1} parent=27 // pred_fallthru
          _
        // Predicated region
        $region37: #{triplet_net_forward.1} parent=27 // pred_check
          %p281 = pneg %p106
        $region38: #{triplet_net_forward.1} parent=27 // pred_check_branch
          %283 = sbr.rel (%p281) target = $region40
        $region39: #{triplet_net_forward.1} parent=27 // pred_region
          %s284 = smul.u32 4, %s24
          %p285 = scmp.lt.s32.totalorder %s23, 0
          %s286 = scalar_select %p285, %s23, 0
          %p287 = scmp.lt.s32.totalorder %s284, 7
          %s288 = scalar_select %p287, %s284, 7
          %s289 = smul.addr %s286, 8
          %s290 = sadd.s32 %s288, %s289
          %s291 = smul.addr %s290, 2
          %s292 = scalar_lea.vmem %s2, %s291
          %s293 = smul.u32 4, %s24
        $region40: #{triplet_net_forward.1} parent=27 // pred_fallthru
          _
        // Predicated region
        $region41: #{triplet_net_forward.1} parent=27 // pred_check
          %p294 = pneg %p132
        $region42: #{triplet_net_forward.1} parent=27 // pred_check_branch
          %296 = sbr.rel (%p294) target = $region44
        $region43: #{triplet_net_forward.1} parent=27 // pred_region
          %s297 = sand.u32 %s122, 1
          %s298 = scalar_lea.sflag [#allocation4], %s297
          %s299 = sand.u32 %s122, 1
          %s300 = smul.addr %s299, 256
          %s301 = scalar_lea.vmem [#allocation3], %s300
          %s302 = smul.u32 64, %s24
          %s304 = ssub.s32 4096, 4096
          %305 = vsyncadd %s298, %s304
          %s306 = smul.addr %s302, 64
          %s307 = scalar_lea.hbm %s3, %s306
          %s308 = sshll.u32 %s301, 4
          %s309 = int_to_ptr.vmem [resolvable:$true] %s308
          %314 = dma.hbm_to_vmem [thread:$0]  %s307, 4096, %s309, %s298, 64, 64, 4
        $region44: #{triplet_net_forward.1} parent=27 // pred_fallthru
          _
      $region28: #{triplet_net_forward.1} parent=5 // pred_fallthru
        _
      %p315 = scmp.le.s32.totalorder 1, %s16
      %p316 = scmp.lt.s32.totalorder %s16, 3
      %p317 = pnand %p315, %p316
      %p318 = pneg %p317
      // Predicated region
      $region45: #{triplet_net_forward.1} parent=5 // pred_check
        _
      $region46: #{triplet_net_forward.1} parent=5 // pred_check_branch
        %320 = sbr.rel (%p317) target = $region48
      $region47: #{triplet_net_forward.1} parent=5 // pred_region
        %s321 = ssub.s32 %s16, 1
        %s322 = sand.u32 %s125, 1
        %s323 = scalar_lea.sflag [#allocation4], %s322
        %s324 = sand.u32 %s125, 1
        %s325 = smul.addr %s324, 256
        %s326 = scalar_lea.vmem [#allocation3], %s325
        // Predicated region
        $region49: #{triplet_net_forward.1} parent=47 // pred_check
          %p327 = pneg %p138
        $region50: #{triplet_net_forward.1} parent=47 // pred_check_branch
          %329 = sbr.rel (%p327) target = $region52
        $region51: #{triplet_net_forward.1} parent=47 // pred_region
          %330 = dma.done %s323, 4096
        $region52: #{triplet_net_forward.1} parent=47 // pred_fallthru
          _
        %s331 = smul.u32 4, %s26
        %p332 = scmp.lt.s32.totalorder %s25, 0
        %s333 = scalar_select %p332, %s25, 0
        %p334 = scmp.lt.s32.totalorder %s331, 7
        %s335 = scalar_select %p334, %s331, 7
        %s336 = smul.addr %s333, 8
        %s337 = sadd.s32 %s335, %s336
        %s338 = smul.addr %s337, 2
        %s339 = scalar_lea.vmem %s0, %s338
        %p340 = pneg %p56
        %p341 = pneg %p53
        %s342 = smul.u32 4, %s26
        %p343 = scmp.lt.s32.totalorder %s25, 0
        %s344 = scalar_select %p343, %s25, 0
        %p345 = scmp.lt.s32.totalorder %s342, 7
        %s346 = scalar_select %p345, %s342, 7
        %s347 = smul.addr %s344, 8
        %s348 = sadd.s32 %s346, %s347
        %s349 = smul.addr %s348, 2
        %s350 = scalar_lea.vmem %s1, %s349
        %p351 = pneg %p84
        %p352 = pneg %p81
        %s353 = smul.u32 4, %s26
        %p354 = scmp.lt.s32.totalorder %s25, 0
        %s355 = scalar_select %p354, %s25, 0
        %p356 = scmp.lt.s32.totalorder %s353, 7
        %s357 = scalar_select %p356, %s353, 7
        %s358 = smul.addr %s355, 8
        %s359 = sadd.s32 %s357, %s358
        %s360 = smul.addr %s359, 2
        %s361 = scalar_lea.vmem %s2, %s360
        %p362 = pneg %p112
        %p363 = pneg %p109
        %s364 = sand.u32 %s125, 1
        %s365 = scalar_lea.sflag [#allocation4], %s364
        %s366 = sand.u32 %s125, 1
        %s367 = smul.addr %s366, 256
        %s368 = scalar_lea.vmem [#allocation3], %s367
        %p369 = pneg %p138
        %p370 = pneg %p135
        %p371 = pneg %p159
        %p372 = pneg %p156
        %p373 = pneg %p180
        %p374 = pneg %p177
        %p375 = pneg %p201
        %p376 = pneg %p198
        %p377 = pneg %p227
        %p378 = pneg %p224
        %p379 = scmp.lt.s32.totalorder %s25, 0
        %s380 = scalar_select %p379, %s25, 0
        %s381 = smul.addr %s380, 2
        %s382 = scalar_lea.vmem %s7, %s381
        %s383 = smul.u32 4, %s26
        %p384 = scmp.lt.s32.totalorder %s25, 0
        %s385 = scalar_select %p384, %s25, 0
        %p386 = scmp.lt.s32.totalorder %s383, 7
        %s387 = scalar_select %p386, %s383, 7
        %s388 = smul.addr %s385, 8
        %s389 = sadd.s32 %s387, %s388
        %s390 = smul.addr %s389, 2
        %s391 = scalar_lea.vmem %s0, %s390
        %s392 = smul.u32 4, %s26
        %s393 = smul.u32 4, %s26
        %p394 = scmp.lt.s32.totalorder %s25, 0
        %s395 = scalar_select %p394, %s25, 0
        %p396 = scmp.lt.s32.totalorder %s393, 7
        %s397 = scalar_select %p396, %s393, 7
        %s398 = smul.addr %s395, 8
        %s399 = sadd.s32 %s397, %s398
        %s400 = smul.addr %s399, 2
        %s401 = scalar_lea.vmem %s1, %s400
        %s402 = smul.u32 4, %s26
        %s403 = smul.u32 4, %s26
        %p404 = scmp.lt.s32.totalorder %s25, 0
        %s405 = scalar_select %p404, %s25, 0
        %p406 = scmp.lt.s32.totalorder %s403, 7
        %s407 = scalar_select %p406, %s403, 7
        %s408 = smul.addr %s405, 8
        %s409 = sadd.s32 %s407, %s408
        %s410 = smul.addr %s409, 2
        %s411 = scalar_lea.vmem %s2, %s410
        %s412 = smul.u32 4, %s26
        %s413 = smul.u32 64, %s26
        %p414 = scmp.lt.s32.totalorder %s25, 0
        %s415 = scalar_select %p414, %s25, 0
        %s416 = smul.addr %s415, 2
        %s417 = scalar_lea.vmem %s7, %s416
        %p419 = scmp.eq.s32.totalorder %s26, 0
        // Predicated region
        $region53: #{triplet_net_forward.1} parent=47 // pred_check
          %p420 = pneg %p419
        $region54: #{triplet_net_forward.1} parent=47 // pred_check_branch
          %422 = sbr.rel (%p420) target = $region56
        $region55: #{triplet_net_forward.1} parent=47 // pred_region
          %423 = vst [vmem:[#allocation2] sm:$0x3f] 0.0
        $region56: #{triplet_net_forward.1} parent=47 // pred_fallthru
          _
        %v424 = vld [vmem:[%s391] sm:$0xff]
        %v426 = vcombine.high %v424, %v424
        %v428 = vunpack.c.l.s4 1983009808
        %v429 = vunpack.c.0.s8 %v428
        %v430 = vlaneseq
        %v431 = vshrl.u32 %v430, 7
        %v432 = vsub.s32 %v429, %v431
        %v433 = vrot.slane %v424, %v432
        %v435 = vunpack.c.l.s4 1983009808
        %v436 = vunpack.c.0.s8 %v435
        %v437 = vlaneseq
        %v438 = vshrl.u32 %v437, 7
        %v439 = vsub.s32 %v436, %v438
        %v440 = vrot.slane %v426, %v439
        %v441 = vcombine.high %v433, %v433
        %v442 = vcombine.high %v440, %v440
        %v447 = vpack.c.bf16 %v433, %v433
        %v448 = vpack.c.bf16 %v441, %v441
        %v449 = vpack.c.bf16 %v440, %v440
        %v450 = vpack.c.bf16 %v442, %v442
        %v451 = vld [vmem:[%s401] sm:$0xff]
        %v453 = vcombine.high %v451, %v451
        %v455 = vunpack.c.l.s4 1983009808
        %v456 = vunpack.c.0.s8 %v455
        %v457 = vlaneseq
        %v458 = vshrl.u32 %v457, 7
        %v459 = vsub.s32 %v456, %v458
        %v460 = vrot.slane %v451, %v459
        %v462 = vunpack.c.l.s4 1983009808
        %v463 = vunpack.c.0.s8 %v462
        %v464 = vlaneseq
        %v465 = vshrl.u32 %v464, 7
        %v466 = vsub.s32 %v463, %v465
        %v467 = vrot.slane %v453, %v466
        %v468 = vcombine.high %v460, %v460
        %v469 = vcombine.high %v467, %v467
        %v474 = vpack.c.bf16 %v460, %v460
        %v475 = vpack.c.bf16 %v468, %v468
        %v476 = vpack.c.bf16 %v467, %v467
        %v477 = vpack.c.bf16 %v469, %v469
        %v478 = vld [vmem:[%s411] sm:$0xff]
        %v480 = vcombine.high %v478, %v478
        %v482 = vunpack.c.l.s4 1983009808
        %v483 = vunpack.c.0.s8 %v482
        %v484 = vlaneseq
        %v485 = vshrl.u32 %v484, 7
        %v486 = vsub.s32 %v483, %v485
        %v487 = vrot.slane %v478, %v486
        %v489 = vunpack.c.l.s4 1983009808
        %v490 = vunpack.c.0.s8 %v489
        %v491 = vlaneseq
        %v492 = vshrl.u32 %v491, 7
        %v493 = vsub.s32 %v490, %v492
        %v494 = vrot.slane %v480, %v493
        %v495 = vcombine.high %v487, %v487
        %v496 = vcombine.high %v494, %v494
        %v501 = vpack.c.bf16 %v487, %v487
        %v502 = vpack.c.bf16 %v495, %v495
        %v503 = vpack.c.bf16 %v494, %v494
        %v504 = vpack.c.bf16 %v496, %v496
        %v509 = vrot.slane %v474, 7
        %v510 = vrot.slane %v475, 7
        %v511 = vrot.slane %v476, 7
        %v512 = vrot.slane %v477, 7
        %v517 = vrot.slane %v501, 6
        %v518 = vrot.slane %v502, 6
        %v519 = vrot.slane %v503, 6
        %v520 = vrot.slane %v504, 6
        %vm521 = vcmask 1040384
        %v524 = vsel %vm521, %v447, %v509
        %v527 = vsel %vm521, %v448, %v510
        %v530 = vsel %vm521, %v449, %v511
        %v533 = vsel %vm521, %v450, %v512
        %vm534 = vcmask 1041408
        %v536 = vsel %vm534, %v524, %v517
        %v539 = vsel %vm534, %v527, %v518
        %v542 = vsel %vm534, %v530, %v519
        %v545 = vsel %vm534, %v533, %v520
        %v547 = vld [vmem:[#allocation2] sm:$0x3f]
        %v548 = vld [vmem:[%s326] sm:$0xf]
        %v549 = vld [vmem:[%s326 + $0x4] sm:$0xf]
        %v550 = vld [vmem:[%s326 + $0x8] sm:$0xf]
        %v551 = vld [vmem:[%s326 + $0xc] sm:$0xf]
        %v552 = vld [vmem:[%s326 + $0x10] sm:$0xf]
        %v553 = vld [vmem:[%s326 + $0x14] sm:$0xf]
        %v554 = vld [vmem:[%s326 + $0x18] sm:$0xf]
        %v555 = vld [vmem:[%s326 + $0x1c] sm:$0xf]
        %v556 = vld [vmem:[%s326 + $0x20] sm:$0xf]
        %v557 = vld [vmem:[%s326 + $0x24] sm:$0xf]
        %v558 = vld [vmem:[%s326 + $0x28] sm:$0xf]
        %v559 = vld [vmem:[%s326 + $0x2c] sm:$0xf]
        %v560 = vld [vmem:[%s326 + $0x30] sm:$0xf]
        %v561 = vld [vmem:[%s326 + $0x34] sm:$0xf]
        %v562 = vld [vmem:[%s326 + $0x38] sm:$0xf]
        %v563 = vld [vmem:[%s326 + $0x3c] sm:$0xf]
        %v564 = vld [vmem:[%s326 + $0x40] sm:$0xf]
        %v565 = vld [vmem:[%s326 + $0x44] sm:$0xf]
        %v566 = vld [vmem:[%s326 + $0x48] sm:$0xf]
        %v567 = vld [vmem:[%s326 + $0x4c] sm:$0xf]
        %v568 = vld [vmem:[%s326 + $0x50] sm:$0xf]
        %v569 = vld [vmem:[%s326 + $0x54] sm:$0xf]
        %v570 = vld [vmem:[%s326 + $0x58] sm:$0xf]
        %v571 = vld [vmem:[%s326 + $0x5c] sm:$0xf]
        %v572 = vld [vmem:[%s326 + $0x60] sm:$0xf]
        %v573 = vld [vmem:[%s326 + $0x64] sm:$0xf]
        %v574 = vld [vmem:[%s326 + $0x68] sm:$0xf]
        %v575 = vld [vmem:[%s326 + $0x6c] sm:$0xf]
        %v576 = vld [vmem:[%s326 + $0x70] sm:$0xf]
        %v577 = vld [vmem:[%s326 + $0x74] sm:$0xf]
        %v578 = vld [vmem:[%s326 + $0x78] sm:$0xf]
        %v579 = vld [vmem:[%s326 + $0x7c] sm:$0xf]
        %v580 = vld [vmem:[%s326 + $0x80] sm:$0xf]
        %v581 = vld [vmem:[%s326 + $0x84] sm:$0xf]
        %v582 = vld [vmem:[%s326 + $0x88] sm:$0xf]
        %v583 = vld [vmem:[%s326 + $0x8c] sm:$0xf]
        %v584 = vld [vmem:[%s326 + $0x90] sm:$0xf]
        %v585 = vld [vmem:[%s326 + $0x94] sm:$0xf]
        %v586 = vld [vmem:[%s326 + $0x98] sm:$0xf]
        %v587 = vld [vmem:[%s326 + $0x9c] sm:$0xf]
        %v588 = vld [vmem:[%s326 + $0xa0] sm:$0xf]
        %v589 = vld [vmem:[%s326 + $0xa4] sm:$0xf]
        %v590 = vld [vmem:[%s326 + $0xa8] sm:$0xf]
        %v591 = vld [vmem:[%s326 + $0xac] sm:$0xf]
        %v592 = vld [vmem:[%s326 + $0xb0] sm:$0xf]
        %v593 = vld [vmem:[%s326 + $0xb4] sm:$0xf]
        %v594 = vld [vmem:[%s326 + $0xb8] sm:$0xf]
        %v595 = vld [vmem:[%s326 + $0xbc] sm:$0xf]
        %v596 = vld [vmem:[%s326 + $0xc0] sm:$0xf]
        %v597 = vld [vmem:[%s326 + $0xc4] sm:$0xf]
        %v598 = vld [vmem:[%s326 + $0xc8] sm:$0xf]
        %v599 = vld [vmem:[%s326 + $0xcc] sm:$0xf]
        %v600 = vld [vmem:[%s326 + $0xd0] sm:$0xf]
        %v601 = vld [vmem:[%s326 + $0xd4] sm:$0xf]
        %v602 = vld [vmem:[%s326 + $0xd8] sm:$0xf]
        %v603 = vld [vmem:[%s326 + $0xdc] sm:$0xf]
        %v604 = vld [vmem:[%s326 + $0xe0] sm:$0xf]
        %v605 = vld [vmem:[%s326 + $0xe4] sm:$0xf]
        %v606 = vld [vmem:[%s326 + $0xe8] sm:$0xf]
        %v607 = vld [vmem:[%s326 + $0xec] sm:$0xf]
        %v608 = vld [vmem:[%s326 + $0xf0] sm:$0xf]
        %v609 = vld [vmem:[%s326 + $0xf4] sm:$0xf]
        %v610 = vld [vmem:[%s326 + $0xf8] sm:$0xf]
        %v611 = vld [vmem:[%s326 + $0xfc] sm:$0xf]
        %v676 = vunpack.c.l.b16 %v548
        %v677 = vunpack.c.l.b16 %v549
        %v678 = vunpack.c.l.b16 %v550
        %v679 = vunpack.c.l.b16 %v551
        %v680 = vunpack.c.l.b16 %v552
        %v681 = vunpack.c.l.b16 %v553
        %v682 = vunpack.c.l.b16 %v554
        %v683 = vunpack.c.l.b16 %v555
        %v684 = vunpack.c.l.b16 %v556
        %v685 = vunpack.c.l.b16 %v557
        %v686 = vunpack.c.l.b16 %v558
        %v687 = vunpack.c.l.b16 %v559
        %v688 = vunpack.c.l.b16 %v560
        %v689 = vunpack.c.l.b16 %v561
        %v690 = vunpack.c.l.b16 %v562
        %v691 = vunpack.c.l.b16 %v563
        %v692 = vunpack.c.l.b16 %v564
        %v693 = vunpack.c.l.b16 %v565
        %v694 = vunpack.c.l.b16 %v566
        %v695 = vunpack.c.l.b16 %v567
        %v696 = vunpack.c.l.b16 %v568
        %v697 = vunpack.c.l.b16 %v569
        %v698 = vunpack.c.l.b16 %v570
        %v699 = vunpack.c.l.b16 %v571
        %v700 = vunpack.c.l.b16 %v572
        %v701 = vunpack.c.l.b16 %v573
        %v702 = vunpack.c.l.b16 %v574
        %v703 = vunpack.c.l.b16 %v575
        %v704 = vunpack.c.l.b16 %v576
        %v705 = vunpack.c.l.b16 %v577
        %v706 = vunpack.c.l.b16 %v578
        %v707 = vunpack.c.l.b16 %v579
        %v708 = vunpack.c.l.b16 %v580
        %v709 = vunpack.c.l.b16 %v581
        %v710 = vunpack.c.l.b16 %v582
        %v711 = vunpack.c.l.b16 %v583
        %v712 = vunpack.c.l.b16 %v584
        %v713 = vunpack.c.l.b16 %v585
        %v714 = vunpack.c.l.b16 %v586
        %v715 = vunpack.c.l.b16 %v587
        %v716 = vunpack.c.l.b16 %v588
        %v717 = vunpack.c.l.b16 %v589
        %v718 = vunpack.c.l.b16 %v590
        %v719 = vunpack.c.l.b16 %v591
        %v720 = vunpack.c.l.b16 %v592
        %v721 = vunpack.c.l.b16 %v593
        %v722 = vunpack.c.l.b16 %v594
        %v723 = vunpack.c.l.b16 %v595
        %v724 = vunpack.c.l.b16 %v596
        %v725 = vunpack.c.l.b16 %v597
        %v726 = vunpack.c.l.b16 %v598
        %v727 = vunpack.c.l.b16 %v599
        %v728 = vunpack.c.l.b16 %v600
        %v729 = vunpack.c.l.b16 %v601
        %v730 = vunpack.c.l.b16 %v602
        %v731 = vunpack.c.l.b16 %v603
        %v732 = vunpack.c.l.b16 %v604
        %v733 = vunpack.c.l.b16 %v605
        %v734 = vunpack.c.l.b16 %v606
        %v735 = vunpack.c.l.b16 %v607
        %v736 = vunpack.c.l.b16 %v608
        %v737 = vunpack.c.l.b16 %v609
        %v738 = vunpack.c.l.b16 %v610
        %v739 = vunpack.c.l.b16 %v611
        %v740 = vpack.c.b16 %v677, %v676
        %v741 = vpack.c.b16 %v679, %v678
        %v742 = vpack.c.b16 %v681, %v680
        %v743 = vpack.c.b16 %v683, %v682
        %v744 = vpack.c.b16 %v685, %v684
        %v745 = vpack.c.b16 %v687, %v686
        %v746 = vpack.c.b16 %v689, %v688
        %v747 = vpack.c.b16 %v691, %v690
        %v748 = vpack.c.b16 %v693, %v692
        %v749 = vpack.c.b16 %v695, %v694
        %v750 = vpack.c.b16 %v697, %v696
        %v751 = vpack.c.b16 %v699, %v698
        %v752 = vpack.c.b16 %v701, %v700
        %v753 = vpack.c.b16 %v703, %v702
        %v754 = vpack.c.b16 %v705, %v704
        %v755 = vpack.c.b16 %v707, %v706
        %v756 = vpack.c.b16 %v709, %v708
        %v757 = vpack.c.b16 %v711, %v710
        %v758 = vpack.c.b16 %v713, %v712
        %v759 = vpack.c.b16 %v715, %v714
        %v760 = vpack.c.b16 %v717, %v716
        %v761 = vpack.c.b16 %v719, %v718
        %v762 = vpack.c.b16 %v721, %v720
        %v763 = vpack.c.b16 %v723, %v722
        %v764 = vpack.c.b16 %v725, %v724
        %v765 = vpack.c.b16 %v727, %v726
        %v766 = vpack.c.b16 %v729, %v728
        %v767 = vpack.c.b16 %v731, %v730
        %v768 = vpack.c.b16 %v733, %v732
        %v769 = vpack.c.b16 %v735, %v734
        %v770 = vpack.c.b16 %v737, %v736
        %v771 = vpack.c.b16 %v739, %v738
        %804 = vmatprep.subr.bf16.mxu0 0
        %805 = vmatpush1.bf16.msra.mxu0 %v747
        %806 = vmatprep.subr.bf16.mxu0 0
        %807 = vmatpush1.bf16.msra.mxu0 %v746
        %808 = vmatprep.subr.bf16.mxu0 0
        %809 = vmatpush1.bf16.msra.mxu0 %v745
        %810 = vmatprep.subr.bf16.mxu0 0
        %811 = vmatpush1.bf16.msra.mxu0 %v744
        %812 = vmatprep.subr.bf16.mxu0 0
        %813 = vmatpush1.bf16.msra.mxu0 %v743
        %814 = vmatprep.subr.bf16.mxu0 0
        %815 = vmatpush1.bf16.msra.mxu0 %v742
        %816 = vmatprep.subr.bf16.mxu0 0
        %817 = vmatpush1.bf16.msra.mxu0 %v741
        %818 = vmatprep.subr.bf16.mxu0 0
        %819 = vmatpush1.bf16.msra.mxu0 %v740
        %820 = vmatprep.subr.bf16.mxu0 0
        %821 = vmatpush2.bf16.msra.mxu0 %v755
        %822 = vmatprep.subr.bf16.mxu0 0
        %823 = vmatpush2.bf16.msra.mxu0 %v754
        %824 = vmatprep.subr.bf16.mxu0 0
        %825 = vmatpush2.bf16.msra.mxu0 %v753
        %826 = vmatprep.subr.bf16.mxu0 0
        %827 = vmatpush2.bf16.msra.mxu0 %v752
        %828 = vmatprep.subr.bf16.mxu0 0
        %829 = vmatpush2.bf16.msra.mxu0 %v751
        %830 = vmatprep.subr.bf16.mxu0 0
        %831 = vmatpush2.bf16.msra.mxu0 %v750
        %832 = vmatprep.subr.bf16.mxu0 0
        %833 = vmatpush2.bf16.msra.mxu0 %v749
        %834 = vmatprep.subr.bf16.mxu0 0
        %835 = vmatpush2.bf16.msra.mxu0 %v748
        %836 = vmatprep.mubr.bf16.mxu0 %v539
        %837 = vmatmul.mubr.bf16.gmra.mxu0 %v536
        %v838 = vpop.f32.mrf.mxu0
        %v839 = vadd.f32 0.0, %v838
        %v840 = vpop.f32.mrf.mxu0
        %v841 = vpop.f32.mrf.mxu0
        %v842 = vpop.f32.mrf.mxu0
        %843 = vdwg.mxu0
        %844 = vmatprep.subr.bf16.mxu0 0
        %845 = vmatpush1.bf16.msra.mxu0 %v763
        %846 = vmatprep.subr.bf16.mxu0 0
        %847 = vmatpush1.bf16.msra.mxu0 %v762
        %848 = vmatprep.subr.bf16.mxu0 0
        %849 = vmatpush1.bf16.msra.mxu0 %v761
        %850 = vmatprep.subr.bf16.mxu0 0
        %851 = vmatpush1.bf16.msra.mxu0 %v760
        %852 = vmatprep.subr.bf16.mxu0 0
        %853 = vmatpush1.bf16.msra.mxu0 %v759
        %854 = vmatprep.subr.bf16.mxu0 0
        %855 = vmatpush1.bf16.msra.mxu0 %v758
        %856 = vmatprep.subr.bf16.mxu0 0
        %857 = vmatpush1.bf16.msra.mxu0 %v757
        %858 = vmatprep.subr.bf16.mxu0 0
        %859 = vmatpush1.bf16.msra.mxu0 %v756
        %860 = vmatprep.subr.bf16.mxu0 0
        %861 = vmatpush2.bf16.msra.mxu0 %v771
        %862 = vmatprep.subr.bf16.mxu0 0
        %863 = vmatpush2.bf16.msra.mxu0 %v770
        %864 = vmatprep.subr.bf16.mxu0 0
        %865 = vmatpush2.bf16.msra.mxu0 %v769
        %866 = vmatprep.subr.bf16.mxu0 0
        %867 = vmatpush2.bf16.msra.mxu0 %v768
        %868 = vmatprep.subr.bf16.mxu0 0
        %869 = vmatpush2.bf16.msra.mxu0 %v767
        %870 = vmatprep.subr.bf16.mxu0 0
        %871 = vmatpush2.bf16.msra.mxu0 %v766
        %872 = vmatprep.subr.bf16.mxu0 0
        %873 = vmatpush2.bf16.msra.mxu0 %v765
        %874 = vmatprep.subr.bf16.mxu0 0
        %875 = vmatpush2.bf16.msra.mxu0 %v764
        %876 = vmatprep.mubr.bf16.mxu0 %v545
        %877 = vmatmul.mubr.bf16.gmra.mxu0 %v542
        %v878 = vpop.f32.mrf.mxu0
        %v879 = vadd.f32 %v839, %v878
        %v880 = vpop.f32.mrf.mxu0
        %v881 = vpop.f32.mrf.mxu0
        %v882 = vpop.f32.mrf.mxu0
        %883 = vdwg.mxu0
        %v884 = vadd.f32 %v547, %v879
        %885 = vst [vmem:[#allocation2] sm:$0x3f] %v884
        %p886 = scmp.eq.s32.totalorder %s26, 1
        // Predicated region
        $region57: #{triplet_net_forward.1} parent=47 // pred_check
          %p887 = pneg %p886
        $region58: #{triplet_net_forward.1} parent=47 // pred_check_branch
          %889 = sbr.rel (%p887) target = $region60
        $region59: #{triplet_net_forward.1} parent=47 // pred_region
          %v890 = vld [vmem:[#allocation2] sm:$0x3f]
          %v891 = vld [vmem:[%s4] sm:$0x1]
          %v893 = vlaneseq
          %v894 = vshrl.u32 %v893, 7
          %v895 = vsub.s32 0, %v894
          %v896 = vrot.slane %v891, %v895
          %v898 = vadd.f32 %v890, %v896
          %v899 = vmax.f32 %v898, 0.0
          %v900 = vpack.c.bf16 %v899, %v899
          %v901 = vld [vmem:[%s5] sm:$0xf]
          %v902 = vld [vmem:[%s5 + $0x4] sm:$0xf]
          %v903 = vld [vmem:[%s5 + $0x8] sm:$0xf]
          %v904 = vld [vmem:[%s5 + $0xc] sm:$0xf]
          %v905 = vld [vmem:[%s5 + $0x10] sm:$0xf]
          %v906 = vld [vmem:[%s5 + $0x14] sm:$0xf]
          %v907 = vld [vmem:[%s5 + $0x18] sm:$0xf]
          %v908 = vld [vmem:[%s5 + $0x1c] sm:$0xf]
          %v909 = vld [vmem:[%s5 + $0x20] sm:$0xf]
          %v910 = vld [vmem:[%s5 + $0x24] sm:$0xf]
          %v911 = vld [vmem:[%s5 + $0x28] sm:$0xf]
          %v912 = vld [vmem:[%s5 + $0x2c] sm:$0xf]
          %v913 = vld [vmem:[%s5 + $0x30] sm:$0xf]
          %v914 = vld [vmem:[%s5 + $0x34] sm:$0xf]
          %v915 = vld [vmem:[%s5 + $0x38] sm:$0xf]
          %v916 = vld [vmem:[%s5 + $0x3c] sm:$0xf]
          %v917 = vld [vmem:[%s6] sm:$0x1]
          %v919 = vlaneseq
          %v920 = vshrl.u32 %v919, 7
          %v921 = vsub.s32 0, %v920
          %v922 = vrot.slane %v917, %v921
          %v940 = vunpack.c.l.b16 %v901
          %v941 = vunpack.c.l.b16 %v902
          %v942 = vunpack.c.l.b16 %v903
          %v943 = vunpack.c.l.b16 %v904
          %v944 = vunpack.c.l.b16 %v905
          %v945 = vunpack.c.l.b16 %v906
          %v946 = vunpack.c.l.b16 %v907
          %v947 = vunpack.c.l.b16 %v908
          %v948 = vunpack.c.l.b16 %v909
          %v949 = vunpack.c.l.b16 %v910
          %v950 = vunpack.c.l.b16 %v911
          %v951 = vunpack.c.l.b16 %v912
          %v952 = vunpack.c.l.b16 %v913
          %v953 = vunpack.c.l.b16 %v914
          %v954 = vunpack.c.l.b16 %v915
          %v955 = vunpack.c.l.b16 %v916
          %v956 = vpack.c.b16 %v941, %v940
          %v957 = vpack.c.b16 %v943, %v942
          %v958 = vpack.c.b16 %v945, %v944
          %v959 = vpack.c.b16 %v947, %v946
          %v960 = vpack.c.b16 %v949, %v948
          %v961 = vpack.c.b16 %v951, %v950
          %v962 = vpack.c.b16 %v953, %v952
          %v963 = vpack.c.b16 %v955, %v954
          %972 = vmatprep.subr.bf16.mxu0 0
          %973 = vmatpush1.bf16.msra.mxu0 %v963
          %974 = vmatprep.subr.bf16.mxu0 0
          %975 = vmatpush1.bf16.msra.mxu0 %v962
          %976 = vmatprep.subr.bf16.mxu0 0
          %977 = vmatpush1.bf16.msra.mxu0 %v961
          %978 = vmatprep.subr.bf16.mxu0 0
          %979 = vmatpush1.bf16.msra.mxu0 %v960
          %980 = vmatprep.subr.bf16.mxu0 0
          %981 = vmatpush1.bf16.msra.mxu0 %v959
          %982 = vmatprep.subr.bf16.mxu0 0
          %983 = vmatpush1.bf16.msra.mxu0 %v958
          %984 = vmatprep.subr.bf16.mxu0 0
          %985 = vmatpush1.bf16.msra.mxu0 %v957
          %986 = vmatprep.subr.bf16.mxu0 0
          %987 = vmatpush1.bf16.msra.mxu0 %v956
          %988 = vmatprep.subr.bf16.mxu0 0
          %989 = vmatpush2.bf16.msra.mxu0 0
          %990 = vmatprep.subr.bf16.mxu0 0
          %991 = vmatpush2.bf16.msra.mxu0 0
          %992 = vmatprep.subr.bf16.mxu0 0
          %993 = vmatpush2.bf16.msra.mxu0 0
          %994 = vmatprep.subr.bf16.mxu0 0
          %995 = vmatpush2.bf16.msra.mxu0 0
          %996 = vmatprep.subr.bf16.mxu0 0
          %997 = vmatpush2.bf16.msra.mxu0 0
          %998 = vmatprep.subr.bf16.mxu0 0
          %999 = vmatpush2.bf16.msra.mxu0 0
          %1000 = vmatprep.subr.bf16.mxu0 0
          %1001 = vmatpush2.bf16.msra.mxu0 0
          %1002 = vmatprep.subr.bf16.mxu0 0
          %1003 = vmatpush2.bf16.msra.mxu0 0
          %1004 = vmatprep.mubr.bf16.mxu0 0
          %1005 = vmatmul.mubr.bf16.gmra.mxu0 %v900
          %v1006 = vpop.f32.mrf.mxu0
          %v1007 = vadd.f32 %v922, %v1006
          %v1008 = vpop.f32.mrf.mxu0
          %v1009 = vpop.f32.mrf.mxu0
          %v1010 = vpop.f32.mrf.mxu0
          %1011 = vdwg.mxu0
          %1012 = vst [vmem:[%s417] sm:$0x3] %v1007
          %s1013 = scalar_lea.vmem %s417, 2
          %1014 = vst [vmem:[%s1013 - $0x2] sm:$0xc] %v1007
          %s1015 = scalar_lea.vmem %s417, 4
          %1016 = vst [vmem:[%s1015 - $0x4] sm:$0x30] %v1007
        $region60: #{triplet_net_forward.1} parent=47 // pred_fallthru
          _
        %p1017 = scmp.lt.s32.totalorder %s25, 0
        %s1018 = scalar_select %p1017, %s25, 0
        %s1019 = smul.addr %s1018, 2
        %s1020 = scalar_lea.vmem %s7, %s1019
        // Predicated region
        $region61: #{triplet_net_forward.1} parent=47 // pred_check
          %p1021 = pneg %p224
        $region62: #{triplet_net_forward.1} parent=47 // pred_check_branch
          %1023 = sbr.rel (%p1021) target = $region64
        $region63: #{triplet_net_forward.1} parent=47 // pred_region
          _
        $region64: #{triplet_net_forward.1} parent=47 // pred_fallthru
          _
        // Predicated region
        $region65: #{triplet_net_forward.1} parent=47 // pred_check
          %p1024 = pneg %p224
        $region66: #{triplet_net_forward.1} parent=47 // pred_check_branch
          %1026 = sbr.rel (%p1024) target = $region68
        $region67: #{triplet_net_forward.1} parent=47 // pred_region
          %p1027 = scmp.lt.s32.totalorder %s25, 0
          %s1028 = scalar_select %p1027, %s25, 0
          %s1029 = smul.addr %s1028, 2
          %s1030 = scalar_lea.vmem %s7, %s1029
        $region68: #{triplet_net_forward.1} parent=47 // pred_fallthru
          _
      $region48: #{triplet_net_forward.1} parent=5 // pred_fallthru
        _
      %p1031 = scmp.le.s32.totalorder 2, %s16
      // Predicated region
      $region69: #{triplet_net_forward.1} parent=5 // pred_check
        %p1032 = pneg %p1031
      $region70: #{triplet_net_forward.1} parent=5 // pred_check_branch
        %1034 = sbr.rel (%p1032) target = $region72
      $region71: #{triplet_net_forward.1} parent=5 // pred_region
        %s1035 = ssub.s32 %s16, 2
      $region72: #{triplet_net_forward.1} parent=5 // pred_fallthru
        _
    $region6: #{triplet_net_forward.1} parent=1 // loop_footer
      %s20 = sadd.s32 1, %s16
    $region7: #{triplet_net_forward.1} parent=1 // loop_footer_branch
      %15 = sbr.rel target = $region3
    $region8: #{triplet_net_forward.1} parent=1 // loop_exit
      _
    %1036 = vsyncpa [#allocation4], 1
    %s1037 = scalar_lea.sflag [#allocation4], 1
    %1038 = vsyncpa %s1037, 1

</llo_original>
